<compile_context>
chip_gen: v7x
topology: tpu7x:2x2x1
jax: 0.10.0
libtpu: 0.0.40
codegen_flags: <defaults>
</compile_context>

<pallas_src>
import jax
import jax.numpy as jnp
import numpy as np
from jax.experimental import pallas as pl
from jax.experimental.pallas import tpu as pltpu


# ----------------------------- Pallas kernel -------------------------------

def _linear_kernel(x_ref, w_ref, b_ref, o_ref):
    # x_ref: (TILE_M, K_pad)  w_ref: (K_pad, O_pad)  b_ref: (1, O_pad)
    # o_ref: (TILE_M, O_pad)
    o_ref[...] = (
        jnp.dot(x_ref[...], w_ref[...], preferred_element_type=jnp.float32)
        + b_ref[...]
    )


# ------------------------------ wrapper -------------------------------------

def _round_up(x, m):
    return (x + m - 1) // m * m


def linear_forward(x, w, b, *, tile_m=256):
    """PyTorch nn.Linear semantics: y = x @ w.T + b.

    x: (B, K) f32, w: (O, K) f32 (PyTorch layout), b: (O,) f32 -> (B, O) f32.
    """
    B, K = x.shape
    O = w.shape[0]

    # Lane/sublane-friendly padding: 128-aligned K and output dims (unmasked
    # vld/vst, full MXU passes), 8-aligned M tiles capped at tile_m rows.
    K_pad = _round_up(K, 128)
    O_pad = _round_up(O, 128)
    tm = min(tile_m, _round_up(B, 8))
    M_pad = _round_up(B, tm)

    x_p = jnp.zeros((M_pad, K_pad), jnp.float32).at[:B, :K].set(x)
    w_p = jnp.zeros((K_pad, O_pad), jnp.float32).at[:K, :O].set(w.T)
    b_p = jnp.zeros((1, O_pad), jnp.float32).at[0, :O].set(b)

    out = pl.pallas_call(
        _linear_kernel,
        out_shape=jax.ShapeDtypeStruct((M_pad, O_pad), jnp.float32),
        grid=(M_pad // tm,),
        in_specs=[
            pl.BlockSpec((tm, K_pad), lambda i: (i, 0)),
            pl.BlockSpec((K_pad, O_pad), lambda i: (0, 0)),   # grid-invariant
            pl.BlockSpec((1, O_pad), lambda i: (0, 0)),       # grid-invariant
        ],
        out_specs=pl.BlockSpec((tm, O_pad), lambda i: (i, 0)),
        compiler_params=pltpu.CompilerParams(
            dimension_semantics=("parallel",)),
    )(x_p, w_p, b_p)

    return out[:B, :O]
    # TODO(synk): for very large num_feature, add a K grid axis with a VMEM
    # f32 accumulator instead of holding the whole (K_pad, O_pad) weight block.


# --------------------------------- main --------------------------------------

if __name__ == "__main__":
    key = jax.random.PRNGKey(0)
    k_w, k_b, k_x = jax.random.split(key, 3)

    B, num_feature, output_size = 16, 64, 10

    # PyTorch nn.Linear default init: uniform(-1/sqrt(fan_in), 1/sqrt(fan_in)).
    bound = 1.0 / np.sqrt(num_feature)
    w = jax.random.uniform(k_w, (output_size, num_feature), jnp.float32,
                           -bound, bound)
    b = jax.random.uniform(k_b, (output_size,), jnp.float32, -bound, bound)
    x = jax.random.normal(k_x, (B, num_feature), jnp.float32)

    fwd = jax.jit(linear_forward)
    out = jax.block_until_ready(fwd(x, w, b))
    assert out.shape == (B, output_size) and out.dtype == jnp.float32

    # Pure-JAX reference (same default precision as the kernel).
    ref = jnp.dot(x, w.T) + b
    np.testing.assert_allclose(np.asarray(out), np.asarray(ref),
                               rtol=1e-3, atol=1e-3)

    print("KERNEL_OK")
</pallas_src>

<mosaic_0001>
module attributes {stable_mosaic.version = 11 : i64} {
  func.func @_linear_kernel(%arg0: i32, %arg1: memref<16x128xf32, #tpu.memory_space<vmem>>, %arg2: memref<128x128xf32, #tpu.memory_space<vmem>>, %arg3: memref<1x128xf32, #tpu.memory_space<vmem>>, %arg4: memref<16x128xf32, #tpu.memory_space<vmem>>) attributes {dimension_semantics = [#tpu.dimension_semantics<parallel>], iteration_bounds = array<i64: 1>, scalar_prefetch = 0 : i64, scratch_operands = 0 : i64, tpu.core_type = #tpu.core_type<tc>, window_params = [{transform_indices = @transform_0, window_bounds = array<i64: 16, 128>}, {pipeline_mode = #tpu.pipeline_mode<synchronous>, transform_indices = @transform_1, window_bounds = array<i64: 128, 128>}, {pipeline_mode = #tpu.pipeline_mode<synchronous>, transform_indices = @transform_2, window_bounds = array<i64: 1, 128>}, {transform_indices = @transform_3, window_bounds = array<i64: 16, 128>}]} {
    %c0 = arith.constant 0 : index
    %c0_0 = arith.constant 0 : index
    %0 = vector.load %arg1[%c0, %c0_0] : memref<16x128xf32, #tpu.memory_space<vmem>>, vector<16x128xf32>
    %c0_1 = arith.constant 0 : index
    %c0_2 = arith.constant 0 : index
    %1 = vector.load %arg2[%c0_1, %c0_2] : memref<128x128xf32, #tpu.memory_space<vmem>>, vector<128x128xf32>
    %cst = arith.constant dense<0.000000e+00> : vector<16x128xf32>
    %2 = tpu.matmul %0, %1, %cst {dimension_numbers = #tpu.dot_dimension_numbers<[1], [0], [0], [1], [0, 0, 1, 1], [], []>} : vector<16x128xf32>, vector<128x128xf32>, vector<16x128xf32> -> vector<16x128xf32>
    %c0_3 = arith.constant 0 : index
    %c0_4 = arith.constant 0 : index
    %3 = vector.load %arg3[%c0_3, %c0_4] : memref<1x128xf32, #tpu.memory_space<vmem>>, vector<1x128xf32>
    %4 = vector.broadcast %3 : vector<1x128xf32> to vector<16x128xf32>
    %5 = arith.addf %2, %4 : vector<16x128xf32>
    %c0_5 = arith.constant 0 : index
    %c0_6 = arith.constant 0 : index
    %6 = vector.load %arg4[%c0_5, %c0_6] : memref<16x128xf32, #tpu.memory_space<vmem>>, vector<16x128xf32>
    tpu.vector_store %arg4[%c0_5, %c0_6], %5 {strides = array<i32>} : memref<16x128xf32, #tpu.memory_space<vmem>>, vector<16x128xf32>,
    return
  }
  func.func @transform_0(%arg0: i32) -> (i32, i32) {
    %c0_i32 = arith.constant 0 : i32
    %c0_i32_0 = arith.constant 0 : i32
    return %arg0, %c0_i32 : i32, i32
  }
  func.func @transform_1(%arg0: i32) -> (i32, i32) {
    %c0_i32 = arith.constant 0 : i32
    %c0_i32_0 = arith.constant 0 : i32
    %c0_i32_1 = arith.constant 0 : i32
    return %c0_i32, %c0_i32_0 : i32, i32
  }
  func.func @transform_2(%arg0: i32) -> (i32, i32) {
    %c0_i32 = arith.constant 0 : i32
    %c0_i32_0 = arith.constant 0 : i32
    %c0_i32_1 = arith.constant 0 : i32
    return %c0_i32, %c0_i32_0 : i32, i32
  }
  func.func @transform_3(%arg0: i32) -> (i32, i32) {
    %c0_i32 = arith.constant 0 : i32
    %c0_i32_0 = arith.constant 0 : i32
    return %arg0, %c0_i32 : i32, i32
  }
}

</mosaic_0001>

<llo_original>
// kernel: linear_forward.1
$region0: #{linear_forward.1}
  #allocation0 [shape = 'u32[]', space=smem, size = 0x4, offset = 0x4, fixed_abs, tag = 'smem constant byte address 0x4 - core index']
  #allocation1 [shape = 'u32[144,128]{1,0:T(1,128)}', space=vmem, size = 0x12000, scoped, tag = 'internal scratch']
  %s0 = inlined_call_operand.vmem [shape: f32[16,128], index: 0, kind: input, shape index: {}]
  %s1 = inlined_call_operand.vmem [shape: f32[128,128], index: 1, kind: input, shape index: {}]
  %s2 = inlined_call_operand.vmem [shape: f32[1,128], index: 2, kind: input, shape index: {}]
  %s3 = inlined_call_operand.hbm [shape: f32[16,128], index: 3, kind: output, shape index: {}]
  %s4 = sld [smem:[#allocation0]]
  $region22: #{linear_forward.1} parent=0
    _
  %s6 = ssub.s32 1, %s4
  %s7 = scalar_select 0, %s6, %s4
  $region1: #{linear_forward.1} parent=0
    #allocation2 [shape = 'u8[8192]{0}', space=vmem, size = 0x2000, scoped, tag = 'output window, operand 0, single buffered']
    #allocation3 [shape = 's32[1]{0}', space=sflag, size = 0x4, scoped, tag = 'scoped memory for linear_forward.1']
    %8 = vsyncpa [#allocation3], 0
    // Predicated region
    $region2: #{linear_forward.1} parent=1 // pred_check
      _
    $region3: #{linear_forward.1} parent=1 // pred_check_branch
      %10 = sbr.rel (0) target = $region5
    $region4: #{linear_forward.1} parent=1 // pred_region
      _
    $region5: #{linear_forward.1} parent=1 // pred_fallthru
      _
    // Predicated region
    $region6: #{linear_forward.1} parent=1 // pred_check
      _
    $region7: #{linear_forward.1} parent=1 // pred_check_branch
      %12 = sbr.rel (0) target = $region9
    $region8: #{linear_forward.1} parent=1 // pred_region
      _
    $region9: #{linear_forward.1} parent=1 // pred_fallthru
      _
    // Predicated region
    $region10: #{linear_forward.1} parent=1 // pred_check
      _
    $region11: #{linear_forward.1} parent=1 // pred_check_branch
      %14 = sbr.rel (0) target = $region13
    $region12: #{linear_forward.1} parent=1 // pred_region
      _
    $region13: #{linear_forward.1} parent=1 // pred_fallthru
      _
    %v15 = vld [vmem:[%s0] sm:$0xff]
    %v16 = vld [vmem:[%s0 + $0x8] sm:$0xff]
    %v17 = vld [vmem:[%s1] sm:$0xff]
    %v18 = vld [vmem:[%s1 + $0x8] sm:$0xff]
    %v19 = vld [vmem:[%s1 + $0x10] sm:$0xff]
    %v20 = vld [vmem:[%s1 + $0x18] sm:$0xff]
    %v21 = vld [vmem:[%s1 + $0x20] sm:$0xff]
    %v22 = vld [vmem:[%s1 + $0x28] sm:$0xff]
    %v23 = vld [vmem:[%s1 + $0x30] sm:$0xff]
    %v24 = vld [vmem:[%s1 + $0x38] sm:$0xff]
    %v25 = vld [vmem:[%s1 + $0x40] sm:$0xff]
    %v26 = vld [vmem:[%s1 + $0x48] sm:$0xff]
    %v27 = vld [vmem:[%s1 + $0x50] sm:$0xff]
    %v28 = vld [vmem:[%s1 + $0x58] sm:$0xff]
    %v29 = vld [vmem:[%s1 + $0x60] sm:$0xff]
    %v30 = vld [vmem:[%s1 + $0x68] sm:$0xff]
    %v31 = vld [vmem:[%s1 + $0x70] sm:$0xff]
    %v32 = vld [vmem:[%s1 + $0x78] sm:$0xff]
    %v33 = vld [vmem:[%s2] sm:$0x1]
    %v35 = vlaneseq
    %v36 = vshrl.u32 %v35, 7
    %v37 = vsub.s32 0, %v36
    %v38 = vrot.slane %v33, %v37
    %40 = vmatprep.subr.mxu0 0.0
    %41 = vmatpush1.msra.mxu0 %v17
    %42 = vmatprep.subr.mxu0 0.0
    %43 = vmatpush1.msra.mxu0 %v18
    %44 = vmatprep.subr.mxu0 0.0
    %45 = vmatpush1.msra.mxu0 %v19
    %46 = vmatprep.subr.mxu0 0.0
    %47 = vmatpush1.msra.mxu0 %v20
    %48 = vmatprep.subr.mxu0 0.0
    %49 = vmatpush1.msra.mxu0 %v21
    %50 = vmatprep.subr.mxu0 0.0
    %51 = vmatpush1.msra.mxu0 %v22
    %52 = vmatprep.subr.mxu0 0.0
    %53 = vmatpush1.msra.mxu0 %v23
    %54 = vmatprep.subr.mxu0 0.0
    %55 = vmatpush1.msra.mxu0 %v24
    %56 = vmatprep.subr.mxu0 0.0
    %57 = vmatpush1.msra.mxu0 %v25
    %58 = vmatprep.subr.mxu0 0.0
    %59 = vmatpush1.msra.mxu0 %v26
    %60 = vmatprep.subr.mxu0 0.0
    %61 = vmatpush1.msra.mxu0 %v27
    %62 = vmatprep.subr.mxu0 0.0
    %63 = vmatpush1.msra.mxu0 %v28
    %64 = vmatprep.subr.mxu0 0.0
    %65 = vmatpush1.msra.mxu0 %v29
    %66 = vmatprep.subr.mxu0 0.0
    %67 = vmatpush1.msra.mxu0 %v30
    %68 = vmatprep.subr.mxu0 0.0
    %69 = vmatpush1.msra.mxu0 %v31
    %70 = vmatprep.subr.mxu0 0.0
    %71 = vmatpush1.msra.mxu0 %v32
    %72 = vmatprep.subr.mxu0 0.0
    %73 = vmatpush1.msra.mxu0 0.0
    %74 = vmatprep.subr.mxu0 0.0
    %75 = vmatpush1.msra.mxu0 0.0
    %76 = vmatprep.subr.mxu0 0.0
    %77 = vmatpush1.msra.mxu0 0.0
    %78 = vmatprep.subr.mxu0 0.0
    %79 = vmatpush1.msra.mxu0 0.0
    %80 = vmatprep.subr.mxu0 0.0
    %81 = vmatpush1.msra.mxu0 0.0
    %82 = vmatprep.subr.mxu0 0.0
    %83 = vmatpush1.msra.mxu0 0.0
    %84 = vmatprep.subr.mxu0 0.0
    %85 = vmatpush1.msra.mxu0 0.0
    %86 = vmatprep.subr.mxu0 0.0
    %87 = vmatpush1.msra.mxu0 0.0
    %88 = vmatprep.subr.mxu0 0.0
    %89 = vmatpush1.msra.mxu0 0.0
    %90 = vmatprep.subr.mxu0 0.0
    %91 = vmatpush1.msra.mxu0 0.0
    %92 = vmatprep.subr.mxu0 0.0
    %93 = vmatpush1.msra.mxu0 0.0
    %94 = vmatprep.subr.mxu0 0.0
    %95 = vmatpush1.msra.mxu0 0.0
    %96 = vmatprep.subr.mxu0 0.0
    %97 = vmatpush1.msra.mxu0 0.0
    %98 = vmatprep.subr.mxu0 0.0
    %99 = vmatpush1.msra.mxu0 0.0
    %100 = vmatprep.subr.mxu0 0.0
    %101 = vmatpush1.msra.mxu0 0.0
    %102 = vmatprep.subr.mxu0 0.0
    %103 = vmatpush1.msra.mxu0 0.0
    %104 = vmatprep.mubr.f32.mxu0 0.0
    %105 = vmatmul.mubr.f32.gmra.mrb[0].mxu0 %v15
    %v106 = vpop.f32.mrb[0].mxu0
    %v107 = vadd.f32 %v38, %v106
    %v108 = vpop.f32.mrb[0].mxu0
    %109 = vmatprep.mubr.f32.mxu0 0.0
    %110 = vmatmul.mubr.f32.gmra.mrb[0].mxu0 %v16
    %v111 = vpop.f32.mrb[0].mxu0
    %v112 = vadd.f32 %v38, %v111
    %v113 = vpop.f32.mrb[0].mxu0
    %114 = vdwg.mxu0
    %115 = vst [vmem:[#allocation2] sm:$0xff] %v107
    %116 = vst [vmem:[#allocation2 + $0x8] sm:$0xff] %v112
    // Predicated region
    $region14: #{linear_forward.1} parent=1 // pred_check
      _
    $region15: #{linear_forward.1} parent=1 // pred_check_branch
      %118 = sbr.rel (0) target = $region17
    $region16: #{linear_forward.1} parent=1 // pred_region
      %s120 = ssub.s32 256, 256
      %121 = vsyncadd [#allocation3], %s120
      %s122 = sshll.u32 [#allocation2], 4
      %s123 = int_to_ptr.vmem [resolvable:$true] %s122
      %128 = dma.vmem_to_hbm [thread:$0]  %s123, 256, %s3, [#allocation3], 128, 128, 8
    $region17: #{linear_forward.1} parent=1 // pred_fallthru
      _
    // Predicated region
    $region18: #{linear_forward.1} parent=1 // pred_check
      _
    $region19: #{linear_forward.1} parent=1 // pred_check_branch
      %130 = sbr.rel (0) target = $region21
    $region20: #{linear_forward.1} parent=1 // pred_region
      %131 = dma.done [#allocation3], 256
    $region21: #{linear_forward.1} parent=1 // pred_fallthru
      _
    %132 = vsyncpa [#allocation3], 1

</llo_original>
